<compile_context>
chip_gen: v7x
topology: tpu7x:2x2x1
jax: 0.10.0
libtpu: 0.0.40
codegen_flags: <defaults>
</compile_context>

<pallas_src>
import functools

import jax
import jax.numpy as jnp
from jax.experimental import pallas as pl
from jax.experimental.pallas import tpu as pltpu

HIDDEN = 256
LANE = 128


def _round_up(x, m):
    return ((x + m - 1) // m) * m


def _actor_kernel(x_ref, w1_ref, b1_ref, w2_ref, b2_ref, w3_ref, b3_ref, o_ref):
    # Fully fused 3-layer MLP; one invocation per batch tile.
    # Weights may be f32 or bf16; activations are cast to the weight dtype just
    # before each MXU matmul, accumulation stays f32, biases are f32.
    cdt = w1_ref.dtype
    x = x_ref[...].astype(cdt)

    h1 = jnp.dot(x, w1_ref[...], preferred_element_type=jnp.float32) + b1_ref[...]
    h1 = jnp.maximum(h1, 0.0)  # ReLU

    h2 = jnp.dot(h1.astype(cdt), w2_ref[...], preferred_element_type=jnp.float32) + b2_ref[...]
    h2 = jnp.maximum(h2, 0.0)  # ReLU

    z3 = jnp.dot(h2.astype(cdt), w3_ref[...], preferred_element_type=jnp.float32) + b3_ref[...]
    o_ref[...] = jnp.tanh(z3).astype(o_ref.dtype)


def prepare_params(params, compute_dtype=jnp.float32):
    """One-time preparation of Actor params for the Pallas kernel.

    Weights are cast to `compute_dtype` (f32 for exact parity, bf16 for the
    MXU-native fast path); biases stay f32. W3/b3 are zero-padded to a
    lane-aligned (multiple of 128) output dim so the kernel's output store is
    lane-dense. Call once and reuse the result across forward calls.
    Returns (prepared_dict, action_dim).
    """
    w3 = params["w3"]
    action_dim = w3.shape[1]
    action_pad = _round_up(action_dim, LANE)
    pad_n = action_pad - action_dim

    def as2d_f32(b):
        return jnp.asarray(b, jnp.float32).reshape(1, -1)

    prepared = {
        "w1": jnp.asarray(params["w1"], compute_dtype),
        "b1": as2d_f32(params["b1"]),
        "w2": jnp.asarray(params["w2"], compute_dtype),
        "b2": as2d_f32(params["b2"]),
        "w3": jnp.pad(jnp.asarray(w3, compute_dtype), ((0, 0), (0, pad_n))),
        "b3": jnp.pad(as2d_f32(params["b3"]), ((0, 0), (0, pad_n))),
    }
    return prepared, action_dim


@functools.partial(jax.jit, static_argnames=("action_dim", "batch_tile"))
def actor_forward(state, prepared, *, action_dim, batch_tile=1024):
    """state: (B, state_dim). prepared: output of prepare_params (weights (in,out),
    biases (1,out) f32, layer-3 padded to a multiple of 128 out features)."""
    w1, b1 = prepared["w1"], prepared["b1"]
    w2, b2 = prepared["w2"], prepared["b2"]
    w3, b3 = prepared["w3"], prepared["b3"]

    B, state_dim = state.shape
    action_pad = w3.shape[1]

    # Batch tiling: tiles are multiples of 8, capped at batch_tile, and the
    # batch is split into >= 2 tiles whenever possible so both v7x TensorCores
    # get work ("parallel" grid axis is sharded across cores).
    B8 = _round_up(B, 8)
    if B8 <= 8:
        tile = B8
    else:
        tile = min(batch_tile, _round_up(B8 // 2, 8))
    B_pad = _round_up(B, tile)
    grid = (B_pad // tile,)

    x = state.astype(jnp.float32)
    if B_pad != B:
        x = jnp.pad(x, ((0, B_pad - B), (0, 0)))

    wbytes = jnp.dtype(w1.dtype).itemsize
    flops = 2 * B_pad * (state_dim * HIDDEN + HIDDEN * HIDDEN + HIDDEN * action_pad)
    bytes_accessed = (
        4 * B_pad * state_dim                                            # state in
        + wbytes * (state_dim * HIDDEN + HIDDEN * HIDDEN + HIDDEN * action_pad)  # W1,W2,W3
        + 4 * (2 * HIDDEN + action_pad)                                  # biases
        + 4 * B_pad * action_pad                                         # output
    )
    cost = pl.CostEstimate(
        flops=flops,
        transcendentals=B_pad * action_pad,  # tanh
        bytes_accessed=bytes_accessed,
    )

    out = pl.pallas_call(
        _actor_kernel,
        out_shape=jax.ShapeDtypeStruct((B_pad, action_pad), jnp.float32),
        grid=grid,
        in_specs=[
            pl.BlockSpec((tile, state_dim), lambda i: (i, 0)),      # state tile (natural K)
            pl.BlockSpec((state_dim, HIDDEN), lambda i: (0, 0)),    # W1 (full array block)
            pl.BlockSpec((1, HIDDEN), lambda i: (0, 0)),            # b1
            pl.BlockSpec((HIDDEN, HIDDEN), lambda i: (0, 0)),       # W2
            pl.BlockSpec((1, HIDDEN), lambda i: (0, 0)),            # b2
            pl.BlockSpec((HIDDEN, action_pad), lambda i: (0, 0)),   # W3 (N-padded, lane-dense)
            pl.BlockSpec((1, action_pad), lambda i: (0, 0)),        # b3 (N-padded)
        ],
        out_specs=pl.BlockSpec((tile, action_pad), lambda i: (i, 0)),
        compiler_params=pltpu.CompilerParams(
            dimension_semantics=("parallel",),
            vmem_limit_bytes=32 * 1024 * 1024,
        ),
        cost_estimate=cost,
    )(x, w1, b1, w2, b2, w3, b3)

    # Strip batch and lane padding outside the kernel.
    return out[:B, :action_dim]


def init_actor_params(key, state_dim, action_dim):
    """Deterministic init matching PyTorch nn.Linear defaults:
    U(-1/sqrt(fan_in), 1/sqrt(fan_in)) for both weight and bias.
    Weights stored as (in_features, out_features)."""
    keys = jax.random.split(key, 6)

    def linear(kw, kb, fan_in, fan_out):
        bound = 1.0 / jnp.sqrt(jnp.float32(fan_in))
        w = jax.random.uniform(kw, (fan_in, fan_out), jnp.float32, -bound, bound)
        b = jax.random.uniform(kb, (1, fan_out), jnp.float32, -bound, bound)
        return w, b

    w1, b1 = linear(keys[0], keys[1], state_dim, HIDDEN)
    w2, b2 = linear(keys[2], keys[3], HIDDEN, HIDDEN)
    w3, b3 = linear(keys[4], keys[5], HIDDEN, action_dim)
    return {"w1": w1, "b1": b1, "w2": w2, "b2": b2, "w3": w3, "b3": b3}


def actor_reference(state, params):
    """Pure-JAX reference for correctness checking."""
    h1 = jax.nn.relu(state @ params["w1"] + params["b1"])
    h2 = jax.nn.relu(h1 @ params["w2"] + params["b2"])
    return jnp.tanh(h2 @ params["w3"] + params["b3"])


if __name__ == "__main__":
    key = jax.random.PRNGKey(0)
    k_state, k_params, k_state2 = jax.random.split(key, 3)

    batch = 2
    state_dim = 16
    action_dim = 8

    state = jax.random.normal(k_state, (batch, state_dim), jnp.float32)
    params = init_actor_params(k_params, state_dim, action_dim)

    # One-time param preparation (padding/casting hoisted out of the hot path).
    prepared_f32, adim = prepare_params(params)

    # f32 path, single tile (batch rounds to 8 -> grid of 1).
    out = jax.block_until_ready(actor_forward(state, prepared_f32, action_dim=adim))
    ref = actor_reference(state, params)
    assert out.shape == (batch, action_dim)
    assert jnp.allclose(out, ref, atol=1e-5, rtol=1e-5), "mismatch vs reference (f32)"

    # f32 path, multi-tile grid (batch_tile=8 forces 3 grid steps).
    state2 = jax.random.normal(k_state2, (20, state_dim), jnp.float32)
    out2 = jax.block_until_ready(
        actor_forward(state2, prepared_f32, action_dim=adim, batch_tile=8)
    )
    ref2 = actor_reference(state2, params)
    assert out2.shape == (20, action_dim)
    assert jnp.allclose(out2, ref2, atol=1e-5, rtol=1e-5), "mismatch vs reference (tiled)"

    # Optional bf16-weight fast path (MXU-native); f32 accumulation, looser tolerance.
    prepared_bf16, _ = prepare_params(params, compute_dtype=jnp.bfloat16)
    out3 = jax.block_until_ready(actor_forward(state2, prepared_bf16, action_dim=adim))
    assert out3.shape == (20, action_dim)
    assert jnp.allclose(out3, ref2, atol=2e-2, rtol=2e-2), "mismatch vs reference (bf16)"

    print("KERNEL_OK")
</pallas_src>

<mosaic_0001>
module attributes {stable_mosaic.version = 11 : i64} {
  func.func @_actor_kernel(%arg0: i32, %arg1: memref<8x16xf32, #tpu.memory_space<vmem>>, %arg2: memref<16x256xf32, #tpu.memory_space<vmem>>, %arg3: memref<1x256xf32, #tpu.memory_space<vmem>>, %arg4: memref<256x256xf32, #tpu.memory_space<vmem>>, %arg5: memref<1x256xf32, #tpu.memory_space<vmem>>, %arg6: memref<256x128xf32, #tpu.memory_space<vmem>>, %arg7: memref<1x128xf32, #tpu.memory_space<vmem>>, %arg8: memref<8x128xf32, #tpu.memory_space<vmem>>) attributes {dimension_semantics = [#tpu.dimension_semantics<parallel>], iteration_bounds = array<i64: 1>, scalar_prefetch = 0 : i64, scratch_operands = 0 : i64, tpu.core_type = #tpu.core_type<tc>, window_params = [{transform_indices = @transform_0, window_bounds = array<i64: 8, 16>}, {pipeline_mode = #tpu.pipeline_mode<synchronous>, transform_indices = @transform_1, window_bounds = array<i64: 16, 256>}, {pipeline_mode = #tpu.pipeline_mode<synchronous>, transform_indices = @transform_2, window_bounds = array<i64: 1, 256>}, {pipeline_mode = #tpu.pipeline_mode<synchronous>, transform_indices = @transform_3, window_bounds = array<i64: 256, 256>}, {pipeline_mode = #tpu.pipeline_mode<synchronous>, transform_indices = @transform_4, window_bounds = array<i64: 1, 256>}, {pipeline_mode = #tpu.pipeline_mode<synchronous>, transform_indices = @transform_5, window_bounds = array<i64: 256, 128>}, {pipeline_mode = #tpu.pipeline_mode<synchronous>, transform_indices = @transform_6, window_bounds = array<i64: 1, 128>}, {transform_indices = @transform_7, window_bounds = array<i64: 8, 128>}]} {
    %c0 = arith.constant 0 : index
    %c0_0 = arith.constant 0 : index
    %0 = vector.load %arg1[%c0, %c0_0] : memref<8x16xf32, #tpu.memory_space<vmem>>, vector<8x16xf32>
    %c0_1 = arith.constant 0 : index
    %c0_2 = arith.constant 0 : index
    %1 = vector.load %arg2[%c0_1, %c0_2] : memref<16x256xf32, #tpu.memory_space<vmem>>, vector<16x256xf32>
    %cst = arith.constant dense<0.000000e+00> : vector<8x256xf32>
    %2 = tpu.matmul %0, %1, %cst {dimension_numbers = #tpu.dot_dimension_numbers<[1], [0], [0], [1], [0, 0, 1, 1], [], []>} : vector<8x16xf32>, vector<16x256xf32>, vector<8x256xf32> -> vector<8x256xf32>
    %c0_3 = arith.constant 0 : index
    %c0_4 = arith.constant 0 : index
    %3 = vector.load %arg3[%c0_3, %c0_4] : memref<1x256xf32, #tpu.memory_space<vmem>>, vector<1x256xf32>
    %4 = vector.broadcast %3 : vector<1x256xf32> to vector<8x256xf32>
    %5 = arith.addf %2, %4 : vector<8x256xf32>
    %cst_5 = arith.constant 0.000000e+00 : f32
    %6 = vector.broadcast %cst_5 : f32 to vector<8x256xf32>
    %7 = arith.maximumf %5, %6 : vector<8x256xf32>
    %c0_6 = arith.constant 0 : index
    %c0_7 = arith.constant 0 : index
    %8 = vector.load %arg4[%c0_6, %c0_7] : memref<256x256xf32, #tpu.memory_space<vmem>>, vector<256x256xf32>
    %cst_8 = arith.constant dense<0.000000e+00> : vector<8x256xf32>
    %9 = tpu.matmul %7, %8, %cst_8 {dimension_numbers = #tpu.dot_dimension_numbers<[1], [0], [0], [1], [0, 0, 1, 1], [], []>} : vector<8x256xf32>, vector<256x256xf32>, vector<8x256xf32> -> vector<8x256xf32>
    %c0_9 = arith.constant 0 : index
    %c0_10 = arith.constant 0 : index
    %10 = vector.load %arg5[%c0_9, %c0_10] : memref<1x256xf32, #tpu.memory_space<vmem>>, vector<1x256xf32>
    %11 = vector.broadcast %10 : vector<1x256xf32> to vector<8x256xf32>
    %12 = arith.addf %9, %11 : vector<8x256xf32>
    %cst_11 = arith.constant 0.000000e+00 : f32
    %13 = vector.broadcast %cst_11 : f32 to vector<8x256xf32>
    %14 = arith.maximumf %12, %13 : vector<8x256xf32>
    %c0_12 = arith.constant 0 : index
    %c0_13 = arith.constant 0 : index
    %15 = vector.load %arg6[%c0_12, %c0_13] : memref<256x128xf32, #tpu.memory_space<vmem>>, vector<256x128xf32>
    %cst_14 = arith.constant dense<0.000000e+00> : vector<8x128xf32>
    %16 = tpu.matmul %14, %15, %cst_14 {dimension_numbers = #tpu.dot_dimension_numbers<[1], [0], [0], [1], [0, 0, 1, 1], [], []>} : vector<8x256xf32>, vector<256x128xf32>, vector<8x128xf32> -> vector<8x128xf32>
    %c0_15 = arith.constant 0 : index
    %c0_16 = arith.constant 0 : index
    %17 = vector.load %arg7[%c0_15, %c0_16] : memref<1x128xf32, #tpu.memory_space<vmem>>, vector<1x128xf32>
    %18 = vector.broadcast %17 : vector<1x128xf32> to vector<8x128xf32>
    %19 = arith.addf %16, %18 : vector<8x128xf32>
    %20 = math.tanh %19 : vector<8x128xf32>
    %c0_17 = arith.constant 0 : index
    %c0_18 = arith.constant 0 : index
    %21 = vector.load %arg8[%c0_17, %c0_18] : memref<8x128xf32, #tpu.memory_space<vmem>>, vector<8x128xf32>
    tpu.vector_store %arg8[%c0_17, %c0_18], %20 {strides = array<i32>} : memref<8x128xf32, #tpu.memory_space<vmem>>, vector<8x128xf32>,
    return
  }
  func.func @transform_0(%arg0: i32) -> (i32, i32) {
    %c0_i32 = arith.constant 0 : i32
    %c0_i32_0 = arith.constant 0 : i32
    return %arg0, %c0_i32 : i32, i32
  }
  func.func @transform_1(%arg0: i32) -> (i32, i32) {
    %c0_i32 = arith.constant 0 : i32
    %c0_i32_0 = arith.constant 0 : i32
    %c0_i32_1 = arith.constant 0 : i32
    return %c0_i32, %c0_i32_0 : i32, i32
  }
  func.func @transform_2(%arg0: i32) -> (i32, i32) {
    %c0_i32 = arith.constant 0 : i32
    %c0_i32_0 = arith.constant 0 : i32
    %c0_i32_1 = arith.constant 0 : i32
    return %c0_i32, %c0_i32_0 : i32, i32
  }
  func.func @transform_3(%arg0: i32) -> (i32, i32) {
    %c0_i32 = arith.constant 0 : i32
    %c0_i32_0 = arith.constant 0 : i32
    %c0_i32_1 = arith.constant 0 : i32
    return %c0_i32, %c0_i32_0 : i32, i32
  }
  func.func @transform_4(%arg0: i32) -> (i32, i32) {
    %c0_i32 = arith.constant 0 : i32
    %c0_i32_0 = arith.constant 0 : i32
    %c0_i32_1 = arith.constant 0 : i32
    return %c0_i32, %c0_i32_0 : i32, i32
  }
  func.func @transform_5(%arg0: i32) -> (i32, i32) {
    %c0_i32 = arith.constant 0 : i32
    %c0_i32_0 = arith.constant 0 : i32
    %c0_i32_1 = arith.constant 0 : i32
    return %c0_i32, %c0_i32_0 : i32, i32
  }
  func.func @transform_6(%arg0: i32) -> (i32, i32) {
    %c0_i32 = arith.constant 0 : i32
    %c0_i32_0 = arith.constant 0 : i32
    %c0_i32_1 = arith.constant 0 : i32
    return %c0_i32, %c0_i32_0 : i32, i32
  }
  func.func @transform_7(%arg0: i32) -> (i32, i32) {
    %c0_i32 = arith.constant 0 : i32
    %c0_i32_0 = arith.constant 0 : i32
    return %arg0, %c0_i32 : i32, i32
  }
}

</mosaic_0001>

<llo_original>
// kernel: actor_forward.1
$region0: #{actor_forward.1}
  #allocation0 [shape = 'u32[]', space=smem, size = 0x4, offset = 0x4, fixed_abs, tag = 'smem constant byte address 0x4 - core index']
  #allocation1 [shape = 'u32[144,128]{1,0:T(1,128)}', space=vmem, size = 0x12000, scoped, tag = 'internal scratch']
  %s0 = inlined_call_operand.vmem [shape: f32[8,16], index: 0, kind: input, shape index: {}]
  %s1 = inlined_call_operand.hbm [shape: f32[16,256], index: 1, kind: input, shape index: {}]
  %s2 = inlined_call_operand.vmem [shape: f32[1,256], index: 2, kind: input, shape index: {}]
  %s3 = inlined_call_operand.hbm [shape: f32[256,256], index: 3, kind: input, shape index: {}]
  %s4 = inlined_call_operand.vmem [shape: f32[1,256], index: 4, kind: input, shape index: {}]
  %s5 = inlined_call_operand.hbm [shape: f32[256,128], index: 5, kind: input, shape index: {}]
  %s6 = inlined_call_operand.vmem [shape: f32[1,128], index: 6, kind: input, shape index: {}]
  %s7 = inlined_call_operand.vmem [shape: f32[8,128], index: 7, kind: output, shape index: {}]
  %s8 = sld [smem:[#allocation0]]
  $region50: #{actor_forward.1} parent=0
    _
  %s10 = ssub.s32 1, %s8
  %s11 = scalar_select 0, %s10, %s8
  $region1: #{actor_forward.1} parent=0
    #allocation2 [shape = 'u8[16384]{0}', space=vmem, size = 0x4000, scoped, tag = 'input window, operand 1, single buffered']
    #allocation3 [shape = 's32[1]{0}', space=sflag, size = 0x4, scoped, tag = 'scoped memory for actor_forward.1']
    #allocation4 [shape = 'u8[262144]{0}', space=vmem, size = 0x40000, scoped, tag = 'input window, operand 3, single buffered']
    #allocation5 [shape = 's32[1]{0}', space=sflag, size = 0x4, scoped, tag = 'scoped memory for actor_forward.1']
    #allocation6 [shape = 'u8[131072]{0}', space=vmem, size = 0x20000, scoped, tag = 'input window, operand 5, single buffered']
    %12 = vsyncpa [#allocation3], 0
    %13 = vsyncpa [#allocation5], 0
    // Predicated region
    $region2: #{actor_forward.1} parent=1 // pred_check
      _
    $region3: #{actor_forward.1} parent=1 // pred_check_branch
      %15 = sbr.rel (0) target = $region5
    $region4: #{actor_forward.1} parent=1 // pred_region
      _
    $region5: #{actor_forward.1} parent=1 // pred_fallthru
      _
    // Predicated region
    $region6: #{actor_forward.1} parent=1 // pred_check
      _
    $region7: #{actor_forward.1} parent=1 // pred_check_branch
      %17 = sbr.rel (0) target = $region9
    $region8: #{actor_forward.1} parent=1 // pred_region
      %s19 = ssub.s32 512, 512
      %20 = vsyncadd [#allocation3], %s19
      %s21 = sshll.u32 [#allocation2], 4
      %s22 = int_to_ptr.vmem [resolvable:$true] %s21
      %27 = dma.hbm_to_vmem [thread:$0]  %s1, 512, %s22, [#allocation3], 256, 256, 16
    $region9: #{actor_forward.1} parent=1 // pred_fallthru
      _
    // Predicated region
    $region10: #{actor_forward.1} parent=1 // pred_check
      _
    $region11: #{actor_forward.1} parent=1 // pred_check_branch
      %29 = sbr.rel (0) target = $region13
    $region12: #{actor_forward.1} parent=1 // pred_region
      _
    $region13: #{actor_forward.1} parent=1 // pred_fallthru
      _
    // Predicated region
    $region14: #{actor_forward.1} parent=1 // pred_check
      _
    $region15: #{actor_forward.1} parent=1 // pred_check_branch
      %31 = sbr.rel (0) target = $region17
    $region16: #{actor_forward.1} parent=1 // pred_region
      %s33 = ssub.s32 8192, 8192
      %34 = vsyncadd [#allocation5], %s33
      %s35 = sshll.u32 [#allocation4], 4
      %s36 = int_to_ptr.vmem [resolvable:$true] %s35
      %41 = dma.hbm_to_vmem [thread:$0]  %s3, 8192, %s36, [#allocation5], 256, 256, 16
    $region17: #{actor_forward.1} parent=1 // pred_fallthru
      _
    // Predicated region
    $region18: #{actor_forward.1} parent=1 // pred_check
      _
    $region19: #{actor_forward.1} parent=1 // pred_check_branch
      %43 = sbr.rel (0) target = $region21
    $region20: #{actor_forward.1} parent=1 // pred_region
      _
    $region21: #{actor_forward.1} parent=1 // pred_fallthru
      _
    // Predicated region
    $region22: #{actor_forward.1} parent=1 // pred_check
      _
    $region23: #{actor_forward.1} parent=1 // pred_check_branch
      %45 = sbr.rel (0) target = $region25
    $region24: #{actor_forward.1} parent=1 // pred_region
      %s47 = ssub.s32 4096, 4096
      %48 = vsyncadd [#allocation5], %s47
      %s49 = sshll.u32 [#allocation6], 4
      %s50 = int_to_ptr.vmem [resolvable:$true] %s49
      %55 = dma.hbm_to_vmem [thread:$0]  %s5, 4096, %s50, [#allocation5], 128, 128, 8
    $region25: #{actor_forward.1} parent=1 // pred_fallthru
      _
    // Predicated region
    $region26: #{actor_forward.1} parent=1 // pred_check
      _
    $region27: #{actor_forward.1} parent=1 // pred_check_branch
      %57 = sbr.rel (0) target = $region29
    $region28: #{actor_forward.1} parent=1 // pred_region
      _
    $region29: #{actor_forward.1} parent=1 // pred_fallthru
      _
    // Predicated region
    $region30: #{actor_forward.1} parent=1 // pred_check
      _
    $region31: #{actor_forward.1} parent=1 // pred_check_branch
      %59 = sbr.rel (0) target = $region33
    $region32: #{actor_forward.1} parent=1 // pred_region
      %60 = dma.done [#allocation3], 512
    $region33: #{actor_forward.1} parent=1 // pred_fallthru
      _
    // Predicated region
    $region34: #{actor_forward.1} parent=1 // pred_check
      _
    $region35: #{actor_forward.1} parent=1 // pred_check_branch
      %62 = sbr.rel (0) target = $region37
    $region36: #{actor_forward.1} parent=1 // pred_region
      %63 = dma.done [#allocation5], 8192
    $region37: #{actor_forward.1} parent=1 // pred_fallthru
      _
    // Predicated region
    $region38: #{actor_forward.1} parent=1 // pred_check
      _
    $region39: #{actor_forward.1} parent=1 // pred_check_branch
      %65 = sbr.rel (0) target = $region41
    $region40: #{actor_forward.1} parent=1 // pred_region
      %66 = dma.done [#allocation5], 4096
    $region41: #{actor_forward.1} parent=1 // pred_fallthru
      _
    %v67 = vld [vmem:[%s0] sm:$0xff]
    %v68 = vld [vmem:[#allocation2] sm:$0xff]
    %v69 = vld [vmem:[#allocation2 + $0x8] sm:$0xff]
    %v70 = vld [vmem:[#allocation2 + $0x10] sm:$0xff]
    %v71 = vld [vmem:[#allocation2 + $0x18] sm:$0xff]
    %v72 = vld [vmem:[%s2] sm:$0x3]
    %v74 = vlaneseq
    %v75 = vshrl.u32 %v74, 7
    %v76 = vsub.s32 0, %v75
    %v77 = vrot.slane %v72, %v76
    %v78 = vlaneseq
    %v79 = vshrl.u32 %v78, 7
    %v80 = vsub.s32 1, %v79
    %v81 = vrot.slane %v72, %v80
    %vm84 = vcmask 130048
    %v86 = vsel %vm84, %v67, 0
    %88 = vmatprep.subr.mxu0 %v69
    %89 = vmatpush1.msra.mxu0 %v68
    %90 = vmatprep.subr.mxu0 %v71
    %91 = vmatpush1.msra.mxu0 %v70
    %92 = vmatprep.subr.mxu0 0.0
    %93 = vmatpush1.msra.mxu0 0.0
    %94 = vmatprep.subr.mxu0 0.0
    %95 = vmatpush1.msra.mxu0 0.0
    %96 = vmatprep.subr.mxu0 0.0
    %97 = vmatpush1.msra.mxu0 0.0
    %98 = vmatprep.subr.mxu0 0.0
    %99 = vmatpush1.msra.mxu0 0.0
    %100 = vmatprep.subr.mxu0 0.0
    %101 = vmatpush1.msra.mxu0 0.0
    %102 = vmatprep.subr.mxu0 0.0
    %103 = vmatpush1.msra.mxu0 0.0
    %104 = vmatprep.subr.mxu0 0.0
    %105 = vmatpush1.msra.mxu0 0.0
    %106 = vmatprep.subr.mxu0 0.0
    %107 = vmatpush1.msra.mxu0 0.0
    %108 = vmatprep.subr.mxu0 0.0
    %109 = vmatpush1.msra.mxu0 0.0
    %110 = vmatprep.subr.mxu0 0.0
    %111 = vmatpush1.msra.mxu0 0.0
    %112 = vmatprep.subr.mxu0 0.0
    %113 = vmatpush1.msra.mxu0 0.0
    %114 = vmatprep.subr.mxu0 0.0
    %115 = vmatpush1.msra.mxu0 0.0
    %116 = vmatprep.subr.mxu0 0.0
    %117 = vmatpush1.msra.mxu0 0.0
    %118 = vmatprep.subr.mxu0 0.0
    %119 = vmatpush1.msra.mxu0 0.0
    %120 = vmatprep.subr.mxu0 0.0
    %121 = vmatpush1.msra.mxu0 0.0
    %122 = vmatprep.subr.mxu0 0.0
    %123 = vmatpush1.msra.mxu0 0.0
    %124 = vmatprep.subr.mxu0 0.0
    %125 = vmatpush1.msra.mxu0 0.0
    %126 = vmatprep.subr.mxu0 0.0
    %127 = vmatpush1.msra.mxu0 0.0
    %128 = vmatprep.subr.mxu0 0.0
    %129 = vmatpush1.msra.mxu0 0.0
    %130 = vmatprep.subr.mxu0 0.0
    %131 = vmatpush1.msra.mxu0 0.0
    %132 = vmatprep.subr.mxu0 0.0
    %133 = vmatpush1.msra.mxu0 0.0
    %134 = vmatprep.subr.mxu0 0.0
    %135 = vmatpush1.msra.mxu0 0.0
    %136 = vmatprep.subr.mxu0 0.0
    %137 = vmatpush1.msra.mxu0 0.0
    %138 = vmatprep.subr.mxu0 0.0
    %139 = vmatpush1.msra.mxu0 0.0
    %140 = vmatprep.subr.mxu0 0.0
    %141 = vmatpush1.msra.mxu0 0.0
    %142 = vmatprep.subr.mxu0 0.0
    %143 = vmatpush1.msra.mxu0 0.0
    %144 = vmatprep.subr.mxu0 0.0
    %145 = vmatpush1.msra.mxu0 0.0
    %146 = vmatprep.subr.mxu0 0.0
    %147 = vmatpush1.msra.mxu0 0.0
    %148 = vmatprep.subr.mxu0 0.0
    %149 = vmatpush1.msra.mxu0 0.0
    %150 = vmatprep.subr.mxu0 0.0
    %151 = vmatpush1.msra.mxu0 0.0
    %152 = vmatprep.mubr.f32.mxu0 0.0
    %153 = vmatmul.mubr.f32.gmra.mrb[0].mxu0 %v86
    %v154 = vpop.f32.mrb[0].mxu0
    %v155 = vadd.f32 %v77, %v154
    %v156 = vpop.f32.mrb[0].mxu0
    %v157 = vadd.f32 %v81, %v156
    %158 = vdwg.mxu0
    %v159 = vmax.f32 %v155, 0.0
    %v160 = vmax.f32 %v157, 0.0
    %v161 = vld [vmem:[#allocation4] sm:$0xff]
    %v162 = vld [vmem:[#allocation4 + $0x8] sm:$0xff]
    %v163 = vld [vmem:[#allocation4 + $0x10] sm:$0xff]
    %v164 = vld [vmem:[#allocation4 + $0x18] sm:$0xff]
    %v165 = vld [vmem:[#allocation4 + $0x20] sm:$0xff]
    %v166 = vld [vmem:[#allocation4 + $0x28] sm:$0xff]
    %v167 = vld [vmem:[#allocation4 + $0x30] sm:$0xff]
    %v168 = vld [vmem:[#allocation4 + $0x38] sm:$0xff]
    %v169 = vld [vmem:[#allocation4 + $0x40] sm:$0xff]
    %v170 = vld [vmem:[#allocation4 + $0x48] sm:$0xff]
    %v171 = vld [vmem:[#allocation4 + $0x50] sm:$0xff]
    %v172 = vld [vmem:[#allocation4 + $0x58] sm:$0xff]
    %v173 = vld [vmem:[#allocation4 + $0x60] sm:$0xff]
    %v174 = vld [vmem:[#allocation4 + $0x68] sm:$0xff]
    %v175 = vld [vmem:[#allocation4 + $0x70] sm:$0xff]
    %v176 = vld [vmem:[#allocation4 + $0x78] sm:$0xff]
    %v177 = vld [vmem:[#allocation4 + $0x80] sm:$0xff]
    %v178 = vld [vmem:[#allocation4 + $0x88] sm:$0xff]
    %v179 = vld [vmem:[#allocation4 + $0x90] sm:$0xff]
    %v180 = vld [vmem:[#allocation4 + $0x98] sm:$0xff]
    %v181 = vld [vmem:[#allocation4 + $0xa0] sm:$0xff]
    %v182 = vld [vmem:[#allocation4 + $0xa8] sm:$0xff]
    %v183 = vld [vmem:[#allocation4 + $0xb0] sm:$0xff]
    %v184 = vld [vmem:[#allocation4 + $0xb8] sm:$0xff]
    %v185 = vld [vmem:[#allocation4 + $0xc0] sm:$0xff]
    %v186 = vld [vmem:[#allocation4 + $0xc8] sm:$0xff]
    %v187 = vld [vmem:[#allocation4 + $0xd0] sm:$0xff]
    %v188 = vld [vmem:[#allocation4 + $0xd8] sm:$0xff]
    %v189 = vld [vmem:[#allocation4 + $0xe0] sm:$0xff]
    %v190 = vld [vmem:[#allocation4 + $0xe8] sm:$0xff]
    %v191 = vld [vmem:[#allocation4 + $0xf0] sm:$0xff]
    %v192 = vld [vmem:[#allocation4 + $0xf8] sm:$0xff]
    %v193 = vld [vmem:[#allocation4 + $0x100] sm:$0xff]
    %v194 = vld [vmem:[#allocation4 + $0x108] sm:$0xff]
    %v195 = vld [vmem:[#allocation4 + $0x110] sm:$0xff]
    %v196 = vld [vmem:[#allocation4 + $0x118] sm:$0xff]
    %v197 = vld [vmem:[#allocation4 + $0x120] sm:$0xff]
    %v198 = vld [vmem:[#allocation4 + $0x128] sm:$0xff]
    %v199 = vld [vmem:[#allocation4 + $0x130] sm:$0xff]
    %v200 = vld [vmem:[#allocation4 + $0x138] sm:$0xff]
    %v201 = vld [vmem:[#allocation4 + $0x140] sm:$0xff]
    %v202 = vld [vmem:[#allocation4 + $0x148] sm:$0xff]
    %v203 = vld [vmem:[#allocation4 + $0x150] sm:$0xff]
    %v204 = vld [vmem:[#allocation4 + $0x158] sm:$0xff]
    %v205 = vld [vmem:[#allocation4 + $0x160] sm:$0xff]
    %v206 = vld [vmem:[#allocation4 + $0x168] sm:$0xff]
    %v207 = vld [vmem:[#allocation4 + $0x170] sm:$0xff]
    %v208 = vld [vmem:[#allocation4 + $0x178] sm:$0xff]
    %v209 = vld [vmem:[#allocation4 + $0x180] sm:$0xff]
    %v210 = vld [vmem:[#allocation4 + $0x188] sm:$0xff]
    %v211 = vld [vmem:[#allocation4 + $0x190] sm:$0xff]
    %v212 = vld [vmem:[#allocation4 + $0x198] sm:$0xff]
    %v213 = vld [vmem:[#allocation4 + $0x1a0] sm:$0xff]
    %v214 = vld [vmem:[#allocation4 + $0x1a8] sm:$0xff]
    %v215 = vld [vmem:[#allocation4 + $0x1b0] sm:$0xff]
    %v216 = vld [vmem:[#allocation4 + $0x1b8] sm:$0xff]
    %v217 = vld [vmem:[#allocation4 + $0x1c0] sm:$0xff]
    %v218 = vld [vmem:[#allocation4 + $0x1c8] sm:$0xff]
    %v219 = vld [vmem:[#allocation4 + $0x1d0] sm:$0xff]
    %v220 = vld [vmem:[#allocation4 + $0x1d8] sm:$0xff]
    %v221 = vld [vmem:[#allocation4 + $0x1e0] sm:$0xff]
    %v222 = vld [vmem:[#allocation4 + $0x1e8] sm:$0xff]
    %v223 = vld [vmem:[#allocation4 + $0x1f0] sm:$0xff]
    %v224 = vld [vmem:[#allocation4 + $0x1f8] sm:$0xff]
    %v225 = vld [vmem:[%s4] sm:$0x3]
    %v227 = vlaneseq
    %v228 = vshrl.u32 %v227, 7
    %v229 = vsub.s32 0, %v228
    %v230 = vrot.slane %v225, %v229
    %v231 = vlaneseq
    %v232 = vshrl.u32 %v231, 7
    %v233 = vsub.s32 1, %v232
    %v234 = vrot.slane %v225, %v233
    %237 = vmatprep.subr.mxu0 %v162
    %238 = vmatpush1.msra.mxu0 %v161
    %239 = vmatprep.subr.mxu0 %v164
    %240 = vmatpush1.msra.mxu0 %v163
    %241 = vmatprep.subr.mxu0 %v166
    %242 = vmatpush1.msra.mxu0 %v165
    %243 = vmatprep.subr.mxu0 %v168
    %244 = vmatpush1.msra.mxu0 %v167
    %245 = vmatprep.subr.mxu0 %v170
    %246 = vmatpush1.msra.mxu0 %v169
    %247 = vmatprep.subr.mxu0 %v172
    %248 = vmatpush1.msra.mxu0 %v171
    %249 = vmatprep.subr.mxu0 %v174
    %250 = vmatpush1.msra.mxu0 %v173
    %251 = vmatprep.subr.mxu0 %v176
    %252 = vmatpush1.msra.mxu0 %v175
    %253 = vmatprep.subr.mxu0 %v178
    %254 = vmatpush1.msra.mxu0 %v177
    %255 = vmatprep.subr.mxu0 %v180
    %256 = vmatpush1.msra.mxu0 %v179
    %257 = vmatprep.subr.mxu0 %v182
    %258 = vmatpush1.msra.mxu0 %v181
    %259 = vmatprep.subr.mxu0 %v184
    %260 = vmatpush1.msra.mxu0 %v183
    %261 = vmatprep.subr.mxu0 %v186
    %262 = vmatpush1.msra.mxu0 %v185
    %263 = vmatprep.subr.mxu0 %v188
    %264 = vmatpush1.msra.mxu0 %v187
    %265 = vmatprep.subr.mxu0 %v190
    %266 = vmatpush1.msra.mxu0 %v189
    %267 = vmatprep.subr.mxu0 %v192
    %268 = vmatpush1.msra.mxu0 %v191
    %269 = vmatprep.subr.mxu0 %v194
    %270 = vmatpush1.msra.mxu0 %v193
    %271 = vmatprep.subr.mxu0 %v196
    %272 = vmatpush1.msra.mxu0 %v195
    %273 = vmatprep.subr.mxu0 %v198
    %274 = vmatpush1.msra.mxu0 %v197
    %275 = vmatprep.subr.mxu0 %v200
    %276 = vmatpush1.msra.mxu0 %v199
    %277 = vmatprep.subr.mxu0 %v202
    %278 = vmatpush1.msra.mxu0 %v201
    %279 = vmatprep.subr.mxu0 %v204
    %280 = vmatpush1.msra.mxu0 %v203
    %281 = vmatprep.subr.mxu0 %v206
    %282 = vmatpush1.msra.mxu0 %v205
    %283 = vmatprep.subr.mxu0 %v208
    %284 = vmatpush1.msra.mxu0 %v207
    %285 = vmatprep.subr.mxu0 %v210
    %286 = vmatpush1.msra.mxu0 %v209
    %287 = vmatprep.subr.mxu0 %v212
    %288 = vmatpush1.msra.mxu0 %v211
    %289 = vmatprep.subr.mxu0 %v214
    %290 = vmatpush1.msra.mxu0 %v213
    %291 = vmatprep.subr.mxu0 %v216
    %292 = vmatpush1.msra.mxu0 %v215
    %293 = vmatprep.subr.mxu0 %v218
    %294 = vmatpush1.msra.mxu0 %v217
    %295 = vmatprep.subr.mxu0 %v220
    %296 = vmatpush1.msra.mxu0 %v219
    %297 = vmatprep.subr.mxu0 %v222
    %298 = vmatpush1.msra.mxu0 %v221
    %299 = vmatprep.subr.mxu0 %v224
    %300 = vmatpush1.msra.mxu0 %v223
    %301 = vmatprep.mubr.f32.mxu0 %v160
    %302 = vmatmul.mubr.f32.gmra.mrb[0].mxu0 %v159
    %v303 = vpop.f32.mrb[0].mxu0
    %v304 = vadd.f32 %v230, %v303
    %v305 = vpop.f32.mrb[0].mxu0
    %v306 = vadd.f32 %v234, %v305
    %307 = vdwg.mxu0
    %v308 = vmax.f32 %v304, 0.0
    %v309 = vmax.f32 %v306, 0.0
    %v310 = vld [vmem:[#allocation6] sm:$0xff]
    %v311 = vld [vmem:[#allocation6 + $0x8] sm:$0xff]
    %v312 = vld [vmem:[#allocation6 + $0x10] sm:$0xff]
    %v313 = vld [vmem:[#allocation6 + $0x18] sm:$0xff]
    %v314 = vld [vmem:[#allocation6 + $0x20] sm:$0xff]
    %v315 = vld [vmem:[#allocation6 + $0x28] sm:$0xff]
    %v316 = vld [vmem:[#allocation6 + $0x30] sm:$0xff]
    %v317 = vld [vmem:[#allocation6 + $0x38] sm:$0xff]
    %v318 = vld [vmem:[#allocation6 + $0x40] sm:$0xff]
    %v319 = vld [vmem:[#allocation6 + $0x48] sm:$0xff]
    %v320 = vld [vmem:[#allocation6 + $0x50] sm:$0xff]
    %v321 = vld [vmem:[#allocation6 + $0x58] sm:$0xff]
    %v322 = vld [vmem:[#allocation6 + $0x60] sm:$0xff]
    %v323 = vld [vmem:[#allocation6 + $0x68] sm:$0xff]
    %v324 = vld [vmem:[#allocation6 + $0x70] sm:$0xff]
    %v325 = vld [vmem:[#allocation6 + $0x78] sm:$0xff]
    %v326 = vld [vmem:[#allocation6 + $0x80] sm:$0xff]
    %v327 = vld [vmem:[#allocation6 + $0x88] sm:$0xff]
    %v328 = vld [vmem:[#allocation6 + $0x90] sm:$0xff]
    %v329 = vld [vmem:[#allocation6 + $0x98] sm:$0xff]
    %v330 = vld [vmem:[#allocation6 + $0xa0] sm:$0xff]
    %v331 = vld [vmem:[#allocation6 + $0xa8] sm:$0xff]
    %v332 = vld [vmem:[#allocation6 + $0xb0] sm:$0xff]
    %v333 = vld [vmem:[#allocation6 + $0xb8] sm:$0xff]
    %v334 = vld [vmem:[#allocation6 + $0xc0] sm:$0xff]
    %v335 = vld [vmem:[#allocation6 + $0xc8] sm:$0xff]
    %v336 = vld [vmem:[#allocation6 + $0xd0] sm:$0xff]
    %v337 = vld [vmem:[#allocation6 + $0xd8] sm:$0xff]
    %v338 = vld [vmem:[#allocation6 + $0xe0] sm:$0xff]
    %v339 = vld [vmem:[#allocation6 + $0xe8] sm:$0xff]
    %v340 = vld [vmem:[#allocation6 + $0xf0] sm:$0xff]
    %v341 = vld [vmem:[#allocation6 + $0xf8] sm:$0xff]
    %v342 = vld [vmem:[%s6] sm:$0x1]
    %v344 = vlaneseq
    %v345 = vshrl.u32 %v344, 7
    %v346 = vsub.s32 0, %v345
    %v347 = vrot.slane %v342, %v346
    %349 = vmatprep.subr.mxu0 0.0
    %350 = vmatpush1.msra.mxu0 %v310
    %351 = vmatprep.subr.mxu0 0.0
    %352 = vmatpush1.msra.mxu0 %v311
    %353 = vmatprep.subr.mxu0 0.0
    %354 = vmatpush1.msra.mxu0 %v312
    %355 = vmatprep.subr.mxu0 0.0
    %356 = vmatpush1.msra.mxu0 %v313
    %357 = vmatprep.subr.mxu0 0.0
    %358 = vmatpush1.msra.mxu0 %v314
    %359 = vmatprep.subr.mxu0 0.0
    %360 = vmatpush1.msra.mxu0 %v315
    %361 = vmatprep.subr.mxu0 0.0
    %362 = vmatpush1.msra.mxu0 %v316
    %363 = vmatprep.subr.mxu0 0.0
    %364 = vmatpush1.msra.mxu0 %v317
    %365 = vmatprep.subr.mxu0 0.0
    %366 = vmatpush1.msra.mxu0 %v318
    %367 = vmatprep.subr.mxu0 0.0
    %368 = vmatpush1.msra.mxu0 %v319
    %369 = vmatprep.subr.mxu0 0.0
    %370 = vmatpush1.msra.mxu0 %v320
    %371 = vmatprep.subr.mxu0 0.0
    %372 = vmatpush1.msra.mxu0 %v321
    %373 = vmatprep.subr.mxu0 0.0
    %374 = vmatpush1.msra.mxu0 %v322
    %375 = vmatprep.subr.mxu0 0.0
    %376 = vmatpush1.msra.mxu0 %v323
    %377 = vmatprep.subr.mxu0 0.0
    %378 = vmatpush1.msra.mxu0 %v324
    %379 = vmatprep.subr.mxu0 0.0
    %380 = vmatpush1.msra.mxu0 %v325
    %381 = vmatprep.subr.mxu0 0.0
    %382 = vmatpush1.msra.mxu0 %v326
    %383 = vmatprep.subr.mxu0 0.0
    %384 = vmatpush1.msra.mxu0 %v327
    %385 = vmatprep.subr.mxu0 0.0
    %386 = vmatpush1.msra.mxu0 %v328
    %387 = vmatprep.subr.mxu0 0.0
    %388 = vmatpush1.msra.mxu0 %v329
    %389 = vmatprep.subr.mxu0 0.0
    %390 = vmatpush1.msra.mxu0 %v330
    %391 = vmatprep.subr.mxu0 0.0
    %392 = vmatpush1.msra.mxu0 %v331
    %393 = vmatprep.subr.mxu0 0.0
    %394 = vmatpush1.msra.mxu0 %v332
    %395 = vmatprep.subr.mxu0 0.0
    %396 = vmatpush1.msra.mxu0 %v333
    %397 = vmatprep.subr.mxu0 0.0
    %398 = vmatpush1.msra.mxu0 %v334
    %399 = vmatprep.subr.mxu0 0.0
    %400 = vmatpush1.msra.mxu0 %v335
    %401 = vmatprep.subr.mxu0 0.0
    %402 = vmatpush1.msra.mxu0 %v336
    %403 = vmatprep.subr.mxu0 0.0
    %404 = vmatpush1.msra.mxu0 %v337
    %405 = vmatprep.subr.mxu0 0.0
    %406 = vmatpush1.msra.mxu0 %v338
    %407 = vmatprep.subr.mxu0 0.0
    %408 = vmatpush1.msra.mxu0 %v339
    %409 = vmatprep.subr.mxu0 0.0
    %410 = vmatpush1.msra.mxu0 %v340
    %411 = vmatprep.subr.mxu0 0.0
    %412 = vmatpush1.msra.mxu0 %v341
    %413 = vmatprep.mubr.f32.mxu0 %v309
    %414 = vmatmul.mubr.f32.gmra.mrb[0].mxu0 %v308
    %v415 = vpop.f32.mrb[0].mxu0
    %v416 = vadd.f32 %v347, %v415
    %v417 = vpop.f32.mrb[0].mxu0
    %418 = vdwg.mxu0
    %v419 = vtanh.pop %v416
    %420 = vst [vmem:[%s7] sm:$0xff] %v419
    // Predicated region
    $region42: #{actor_forward.1} parent=1 // pred_check
      _
    $region43: #{actor_forward.1} parent=1 // pred_check_branch
      %422 = sbr.rel (0) target = $region45
    $region44: #{actor_forward.1} parent=1 // pred_region
      _
    $region45: #{actor_forward.1} parent=1 // pred_fallthru
      _
    // Predicated region
    $region46: #{actor_forward.1} parent=1 // pred_check
      _
    $region47: #{actor_forward.1} parent=1 // pred_check_branch
      %424 = sbr.rel (0) target = $region49
    $region48: #{actor_forward.1} parent=1 // pred_region
      _
    $region49: #{actor_forward.1} parent=1 // pred_fallthru
      _
    %425 = vsyncpa [#allocation3], 1
    %426 = vsyncpa [#allocation5], 1

</llo_original>
